<compile_context>
chip_gen: v5e
topology: v5e:2x2
jax: 0.10.0
libtpu: 0.0.40
codegen_flags: <defaults>
</compile_context>

<pallas_src>
import numpy as np
import jax
import jax.numpy as jnp
from jax.experimental import pallas as pl
from jax.experimental.pallas import tpu as pltpu


# --------------------------- init path: per-channel sum / sum-of-squares -------------------
def _stats_kernel(x_ref, sum_ref, sq_ref):
    # x_ref: (1, C, SB) block; sum_ref/sq_ref: (1, C, L) resident accumulators
    # (L=128 lane-dense partials when SB % 128 == 0, else L=1 full per-channel sums).
    @pl.when(pl.program_id(1) == 0)          # batch (reduction) axis is grid axis 1
    def _():
        sum_ref[...] = jnp.zeros_like(sum_ref)
        sq_ref[...] = jnp.zeros_like(sq_ref)

    x = x_ref[...].astype(jnp.float32)       # cast per block (no wrapper-side f32 HBM copy)
    L = sum_ref.shape[-1]
    if L == 1:                               # non-lane-dense fallback (S % 128 != 0)
        sum_ref[...] += jnp.sum(x, axis=2, keepdims=True)
        sq_ref[...] += jnp.sum(x * x, axis=2, keepdims=True)
    else:
        # Lane-dense partial accumulation: static 128-wide column chunks, pure VPU adds
        # (no cross-lane XLU reduce, no relayout).  Final 128-lane reduce happens in jnp.
        ps = jnp.zeros(sum_ref.shape, jnp.float32)
        pq = jnp.zeros(sum_ref.shape, jnp.float32)
        for k in range(x.shape[-1] // L):    # SB // 128 is static and small (<= 64)
            xk = x[:, :, k * L:(k + 1) * L]
            ps += xk
            pq += xk * xk
        sum_ref[...] += ps
        sq_ref[...] += pq


def _stats_spatial_tiles(S, C, itemsize, cap=4 << 20, max_chunks=64):
    """Spatial block SB (a divisor of S) and spatial-grid size SG for the stats kernel."""
    if S % 128 != 0:
        return S, 1                          # non-lane-dense fallback: one full-extent block
    m = S // 128
    divs = sorted({d for i in range(1, int(m ** 0.5) + 1) if m % i == 0
                   for d in (i, m // i)}, reverse=True)
    fits = lambda d: d <= max_chunks and C * 128 * d * itemsize <= cap
    d = next((d for d in divs if fits(d)), 1)
    if m // d < 2:                           # prefer >=2 spatial tiles (megacore / pipelining)
        for d2 in divs:
            if d2 < d and m // d2 >= 2 and d2 * 8 >= d:
                d = d2
                break
    return 128 * d, m // d


def actnorm_initialize(x):
    """PyTorch ActNorm.initialize: loc = -mean_c, scale = 1/(std_c + 1e-6), unbiased std."""
    N, C, H, W = x.shape
    S = H * W
    SB, SG = _stats_spatial_tiles(S, C, x.dtype.itemsize)
    L = 128 if SB % 128 == 0 else 1

    sums, sqs = pl.pallas_call(
        _stats_kernel,
        out_shape=(jax.ShapeDtypeStruct((SG, C, L), jnp.float32),
                   jax.ShapeDtypeStruct((SG, C, L), jnp.float32)),
        grid_spec=pltpu.PrefetchScalarGridSpec(
            num_scalar_prefetch=0,
            grid=(SG, N),                    # reduction (batch) axis last
            in_specs=[pl.BlockSpec((1, C, SB), lambda sg, n: (n, 0, sg))],
            out_specs=[pl.BlockSpec((1, C, L), lambda sg, n: (sg, 0, 0)),
                       pl.BlockSpec((1, C, L), lambda sg, n: (sg, 0, 0))],
        ),
        compiler_params=pltpu.CompilerParams(
            dimension_semantics=("parallel", "arbitrary"),
            vmem_limit_bytes=48 << 20),
    )(x.reshape(N, C, S))                    # no wrapper-side astype: kernel casts per block

    total = N * S
    sum_c = jnp.sum(sums, axis=(0, 2))       # tiny finishing reductions stay in XLA
    sq_c = jnp.sum(sqs, axis=(0, 2))
    mean = sum_c / total
    # Unbiased variance (PyTorch flatten.std(1)); guard the degenerate n==1 case.
    # TODO(synk): single-pass sumsq - n*mean^2 can lose precision when |mean| >> std.
    var = jnp.maximum(sq_c - total * mean * mean, 0.0) / max(total - 1, 1)
    std = jnp.sqrt(var)
    return -mean, 1.0 / (std + 1e-6)         # (loc, scale), each (C,)


# --------------------------- forward: y = scale * x + bias (bias = scale*loc) --------------
def _actnorm_fwd_kernel(x_ref, p_ref, o_ref):
    # x_ref/o_ref: (TR, TS) tile of the 2-D view.
    # p_ref: merged affine params, (2, TR, 1) per-row or (2, 1, TS) per-column;
    #        p[0] = scale, p[1] = scale*loc.
    x = x_ref[...].astype(jnp.float32)       # TODO(synk): bf16 compute path for v6e/v7x
    o_ref[...] = (x * p_ref[0] + p_ref[1]).astype(o_ref.dtype)


def _plan_fwd_tiles(Rows, Cols, itemsize, cap=6 << 20):
    """Tile sizes and cdiv grid for the elementwise kernel (no divisibility requirement)."""
    # Lane tile: multiple of 128 when possible, else the full (masked) last dim.
    if Cols % 128 == 0 and 8 * Cols * itemsize > cap:
        TS = max(128, (cap // (8 * itemsize)) // 128 * 128)
    else:
        TS = Cols
    grid_s = pl.cdiv(Cols, TS)
    # Row tile: multiple of 8 sublanes (or the full dim when Rows < 8), sized to the cap.
    if Rows < 8:
        TR = Rows
    else:
        max_tr = max(8, (cap // (TS * itemsize)) // 8 * 8)
        TR = max(8, min(max_tr, (Rows // 8) * 8))
    grid_r = pl.cdiv(Rows, TR)
    # Make sure the "parallel" axes have >=2 steps when there are enough rows (v7x megacore).
    if grid_r * grid_s < 2 and Rows >= 16:
        grid_r = 2
    # Balance row tiles across the grid (avoid one full tile + a tiny ragged tail).
    if grid_r > 1:
        TR = max(8, (pl.cdiv(Rows, grid_r) + 7) // 8 * 8)
        grid_r = pl.cdiv(Rows, TR)
    return TR, TS, grid_r, grid_s


def actnorm_forward(x, loc, scale, logdet=True):
    """x: (N, C, H, W); loc/scale: per-channel parameters (any shape with C elements)."""
    N, C, H, W = x.shape
    S = H * W
    scale = scale.reshape(-1).astype(jnp.float32)
    loc = loc.reshape(-1).astype(jnp.float32)
    bias = scale * loc                        # y = scale*x + bias == scale*(x + loc)

    if S % 128 == 0:
        # Lane-dense (N*C, H*W) view; params vary per row -> (2, Rows, 1) merged array.
        Rows, Cols = N * C, S
        x2 = x.reshape(Rows, Cols)
        params = jnp.stack([jnp.tile(scale, N), jnp.tile(bias, N)]).reshape(2, Rows, 1)
        TR, TS, grid_r, grid_s = _plan_fwd_tiles(Rows, Cols, x.dtype.itemsize)
        p_spec = pl.BlockSpec((2, TR, 1), lambda i, j: (0, i, 0))
    else:
        # Small / awkward spatial extent: (N, C*H*W) view keeps the output last dim as
        # lane-dense as possible; params vary per column -> (2, 1, Cols) merged array.
        Rows, Cols = N, C * S
        x2 = x.reshape(Rows, Cols)
        params = jnp.stack([jnp.repeat(scale, S), jnp.repeat(bias, S)]).reshape(2, 1, Cols)
        TR, TS, grid_r, grid_s = _plan_fwd_tiles(Rows, Cols, x.dtype.itemsize)
        p_spec = pl.BlockSpec((2, 1, TS), lambda i, j: (0, 0, j))

    out = pl.pallas_call(
        _actnorm_fwd_kernel,
        out_shape=jax.ShapeDtypeStruct((Rows, Cols), x.dtype),
        grid_spec=pltpu.PrefetchScalarGridSpec(
            num_scalar_prefetch=0,
            grid=(grid_r, grid_s),
            in_specs=[pl.BlockSpec((TR, TS), lambda i, j: (i, j)), p_spec],
            out_specs=pl.BlockSpec((TR, TS), lambda i, j: (i, j)),
        ),
        compiler_params=pltpu.CompilerParams(
            dimension_semantics=("parallel", "parallel"),   # independent tiles, megacore-safe
            vmem_limit_bytes=48 << 20),                     # >v5e 16MiB default, <v7x 64MiB
    )(x2, params)
    out = out.reshape(N, C, H, W)

    if logdet:
        # O(C) scalar reduction; a kernel launch here would be pure overhead.
        ld = H * W * jnp.sum(jnp.log(jnp.abs(scale)))
        return out, ld
    return out


# --------------------------- module-like stateful wrapper ----------------------------------
class ActNorm:
    """Functional mirror of the PyTorch ActNorm module (forward semantics preserved)."""

    def __init__(self, in_channel, logdet=True):
        self.loc = jnp.zeros((1, in_channel, 1, 1), jnp.float32)
        self.scale = jnp.ones((1, in_channel, 1, 1), jnp.float32)
        self.initialized = 0      # host-side flag (like the registered uint8 buffer);
        self.logdet = logdet      # first call is therefore not jit/scan-traceable.

    def __call__(self, x):
        if self.initialized == 0:             # data-dependent init on first forward call
            loc_c, scale_c = actnorm_initialize(x)
            self.loc = loc_c.reshape(1, -1, 1, 1)
            self.scale = scale_c.reshape(1, -1, 1, 1)
            self.initialized = 1
        return actnorm_forward(x, self.loc, self.scale, logdet=self.logdet)

    def reverse(self, y):
        # y/scale - loc == (1/scale) * (y + (-loc*scale)); reuse the forward kernel.
        scale = self.scale.reshape(-1)
        loc = self.loc.reshape(-1)
        return actnorm_forward(y, loc=-loc * scale, scale=1.0 / scale, logdet=False)


# --------------------------- self-test ------------------------------------------------------
if __name__ == "__main__":
    key = jax.random.PRNGKey(0)
    N, C, H, W = 2, 4, 16, 16
    x = jax.random.normal(key, (N, C, H, W), jnp.float32) * 1.5 + 0.3

    layer = ActNorm(C, logdet=True)
    out, logdet = jax.block_until_ready(layer(x))

    # Pure-JAX reference of the PyTorch forward (including first-call initialization).
    flatten = jnp.transpose(x, (1, 0, 2, 3)).reshape(C, -1)
    mean = flatten.mean(axis=1)
    std = jnp.std(flatten, axis=1, ddof=1)
    loc_ref = -mean
    scale_ref = 1.0 / (std + 1e-6)
    out_ref = scale_ref[None, :, None, None] * (x + loc_ref[None, :, None, None])
    logdet_ref = H * W * jnp.sum(jnp.log(jnp.abs(scale_ref)))

    assert out.shape == (N, C, H, W), out.shape
    np.testing.assert_allclose(np.asarray(out), np.asarray(out_ref), rtol=1e-4, atol=1e-4)
    np.testing.assert_allclose(float(logdet), float(logdet_ref), rtol=1e-4, atol=1e-4)

    # Second call must reuse the stored (already-initialized) parameters.
    out2, logdet2 = jax.block_until_ready(layer(x))
    np.testing.assert_allclose(np.asarray(out2), np.asarray(out), rtol=1e-6, atol=1e-6)
    np.testing.assert_allclose(float(logdet2), float(logdet), rtol=1e-6, atol=1e-6)

    # reverse() round-trips forward().
    x_rec = jax.block_until_ready(layer.reverse(out))
    np.testing.assert_allclose(np.asarray(x_rec), np.asarray(x), rtol=1e-4, atol=1e-4)

    # Small-spatial shape exercising the lane-density fallback (H*W % 128 != 0 paths).
    xs = jax.random.normal(jax.random.PRNGKey(1), (2, 4, 3, 3), jnp.float32) * 2.0 - 0.5
    layer_s = ActNorm(4, logdet=False)
    out_s = jax.block_until_ready(layer_s(xs))
    flat_s = jnp.transpose(xs, (1, 0, 2, 3)).reshape(4, -1)
    loc_s = -flat_s.mean(axis=1)
    scale_s = 1.0 / (jnp.std(flat_s, axis=1, ddof=1) + 1e-6)
    ref_s = scale_s[None, :, None, None] * (xs + loc_s[None, :, None, None])
    np.testing.assert_allclose(np.asarray(out_s), np.asarray(ref_s), rtol=1e-4, atol=1e-4)

    print("KERNEL_OK")
</pallas_src>

<mosaic_0001>
module attributes {stable_mosaic.version = 11 : i64} {
  func.func @_stats_kernel(%arg0: i32, %arg1: i32, %arg2: memref<1x4x128xf32, #tpu.memory_space<vmem>>, %arg3: memref<1x4x128xf32, #tpu.memory_space<vmem>>, %arg4: memref<1x4x128xf32, #tpu.memory_space<vmem>>) attributes {dimension_semantics = [#tpu.dimension_semantics<parallel>, #tpu.dimension_semantics<arbitrary>], iteration_bounds = array<i64: 2, 2>, scalar_prefetch = 0 : i64, scratch_operands = 0 : i64, tpu.core_type = #tpu.core_type<tc>, window_params = [{transform_indices = @transform_0, window_bounds = array<i64: 1, 4, 128>}, {transform_indices = @transform_1, window_bounds = array<i64: 1, 4, 128>}, {transform_indices = @transform_2, window_bounds = array<i64: 1, 4, 128>}]} {
    %c0_i32 = arith.constant 0 : i32
    %0 = arith.cmpi eq, %arg1, %c0_i32 : i32
    %1 = arith.extui %0 : i1 to i32
    %c0_i32_0 = arith.constant 0 : i32
    %2 = arith.cmpi ne, %1, %c0_i32_0 : i32
    scf.if %2 {
      %cst_16 = arith.constant 0.000000e+00 : f32
      %15 = vector.broadcast %cst_16 : f32 to vector<1x4x128xf32>
      %c0_17 = arith.constant 0 : index
      %c0_18 = arith.constant 0 : index
      %c0_19 = arith.constant 0 : index
      %16 = vector.load %arg3[%c0_17, %c0_18, %c0_19] : memref<1x4x128xf32, #tpu.memory_space<vmem>>, vector<1x4x128xf32>
      tpu.vector_store %arg3[%c0_17, %c0_18, %c0_19], %15 {strides = array<i32>} : memref<1x4x128xf32, #tpu.memory_space<vmem>>, vector<1x4x128xf32>,
      %cst_20 = arith.constant 0.000000e+00 : f32
      %17 = vector.broadcast %cst_20 : f32 to vector<1x4x128xf32>
      %c0_21 = arith.constant 0 : index
      %c0_22 = arith.constant 0 : index
      %c0_23 = arith.constant 0 : index
      %18 = vector.load %arg4[%c0_21, %c0_22, %c0_23] : memref<1x4x128xf32, #tpu.memory_space<vmem>>, vector<1x4x128xf32>
      tpu.vector_store %arg4[%c0_21, %c0_22, %c0_23], %17 {strides = array<i32>} : memref<1x4x128xf32, #tpu.memory_space<vmem>>, vector<1x4x128xf32>,
    } else {
    }
    %c0 = arith.constant 0 : index
    %c0_1 = arith.constant 0 : index
    %c0_2 = arith.constant 0 : index
    %3 = vector.load %arg2[%c0, %c0_1, %c0_2] : memref<1x4x128xf32, #tpu.memory_space<vmem>>, vector<1x4x128xf32>
    %cst = arith.constant 0.000000e+00 : f32
    %4 = vector.broadcast %cst : f32 to vector<1x4x128xf32>
    %cst_3 = arith.constant 0.000000e+00 : f32
    %5 = vector.broadcast %cst_3 : f32 to vector<1x4x128xf32>
    %6 = arith.addf %4, %3 : vector<1x4x128xf32>
    %7 = arith.mulf %3, %3 : vector<1x4x128xf32>
    %8 = arith.addf %5, %7 : vector<1x4x128xf32>
    %c0_4 = arith.constant 0 : index
    %c0_5 = arith.constant 0 : index
    %c0_6 = arith.constant 0 : index
    %9 = vector.load %arg3[%c0_4, %c0_5, %c0_6] : memref<1x4x128xf32, #tpu.memory_space<vmem>>, vector<1x4x128xf32>
    %10 = arith.addf %9, %6 : vector<1x4x128xf32>
    %c0_7 = arith.constant 0 : index
    %c0_8 = arith.constant 0 : index
    %c0_9 = arith.constant 0 : index
    %11 = vector.load %arg3[%c0_7, %c0_8, %c0_9] : memref<1x4x128xf32, #tpu.memory_space<vmem>>, vector<1x4x128xf32>
    tpu.vector_store %arg3[%c0_7, %c0_8, %c0_9], %10 {strides = array<i32>} : memref<1x4x128xf32, #tpu.memory_space<vmem>>, vector<1x4x128xf32>,
    %c0_10 = arith.constant 0 : index
    %c0_11 = arith.constant 0 : index
    %c0_12 = arith.constant 0 : index
    %12 = vector.load %arg4[%c0_10, %c0_11, %c0_12] : memref<1x4x128xf32, #tpu.memory_space<vmem>>, vector<1x4x128xf32>
    %13 = arith.addf %12, %8 : vector<1x4x128xf32>
    %c0_13 = arith.constant 0 : index
    %c0_14 = arith.constant 0 : index
    %c0_15 = arith.constant 0 : index
    %14 = vector.load %arg4[%c0_13, %c0_14, %c0_15] : memref<1x4x128xf32, #tpu.memory_space<vmem>>, vector<1x4x128xf32>
    tpu.vector_store %arg4[%c0_13, %c0_14, %c0_15], %13 {strides = array<i32>} : memref<1x4x128xf32, #tpu.memory_space<vmem>>, vector<1x4x128xf32>,
    return
  }
  func.func @transform_0(%arg0: i32, %arg1: i32) -> (i32, i32, i32) {
    %c0_i32 = arith.constant 0 : i32
    %c0_i32_0 = arith.constant 0 : i32
    return %arg1, %c0_i32, %arg0 : i32, i32, i32
  }
  func.func @transform_1(%arg0: i32, %arg1: i32) -> (i32, i32, i32) {
    %c0_i32 = arith.constant 0 : i32
    %c0_i32_0 = arith.constant 0 : i32
    %c0_i32_1 = arith.constant 0 : i32
    return %arg0, %c0_i32, %c0_i32_0 : i32, i32, i32
  }
  func.func @transform_2(%arg0: i32, %arg1: i32) -> (i32, i32, i32) {
    %c0_i32 = arith.constant 0 : i32
    %c0_i32_0 = arith.constant 0 : i32
    %c0_i32_1 = arith.constant 0 : i32
    return %arg0, %c0_i32, %c0_i32_0 : i32, i32, i32
  }
}

</mosaic_0001>

<llo_original>
// kernel: tpu_custom_call.1
$region0: #{tpu_custom_call.1}
  #allocation0 [shape = 'u32[]', space=smem, size = 0x4, offset = 0x4, fixed_abs, tag = 'smem constant byte address 0x4 - core index']
  #allocation1 [shape = 'u32[72,128]{1,0:T(1,128)}', space=vmem, size = 0x9000, scoped, tag = 'internal scratch']
  %s0 = inlined_call_operand.hbm [shape: f32[2,4,256], index: 0, kind: input, shape index: {}]
  %s1 = inlined_call_operand.hbm [shape: f32[2,4,128], index: 1, kind: output, shape index: {0}]
  %s2 = inlined_call_operand.hbm [shape: f32[2,4,128], index: 2, kind: output, shape index: {1}]
  %3 = xla_tuple %s1, %s2
  %s4 = sld [smem:[#allocation0]]
  $region53: #{tpu_custom_call.1} parent=0
    _
  %s6 = ssub.s32 1, %s4
  %s7 = scalar_select 0, %s6, %s4
  $region1: #{tpu_custom_call.1} parent=0
    #allocation2 [shape = 'u8[4096]{0}', space=vmem, size = 0x1000, scoped, tag = 'input window, operand 0']
    #allocation3 [shape = 's32[2]{0}', space=sflag, size = 0x8, scoped, tag = 'scoped memory for tpu_custom_call.1']
    #allocation4 [shape = 's32[2]{0}', space=sflag, size = 0x8, scoped, tag = 'scoped memory for tpu_custom_call.1']
    #allocation5 [shape = 'u8[4096]{0}', space=vmem, size = 0x1000, scoped, tag = 'output window, operand 0']
    #allocation6 [shape = 'u8[4096]{0}', space=vmem, size = 0x1000, scoped, tag = 'output window, operand 1']
    #allocation7 [shape = 's32[2]{0}', space=sflag, size = 0x8, scoped, tag = 'scoped memory for tpu_custom_call.1']
    %8 = vsyncpa [#allocation3], 0
    %s9 = scalar_lea.sflag [#allocation3], 1
    %10 = vsyncpa %s9, 0
    %11 = vsyncpa [#allocation4], 0
    %s12 = scalar_lea.sflag [#allocation4], 1
    %13 = vsyncpa %s12, 0
    %14 = vsyncpa [#allocation7], 0
    %s15 = scalar_lea.sflag [#allocation7], 1
    %16 = vsyncpa %s15, 0
    loop: start=0, step=1, limit=6
    $region2: #{tpu_custom_call.1} parent=1 // loop_pre_header
      _
    $region3: #{tpu_custom_call.1} parent=1 // loop_header
      %s18 = sphi 0, %s22
      %p19 = scmp.ge.s32.totalorder %s18, 6
      %s25 = sphi 0, %s37
      %s26 = sphi 0, %s33
      %s27 = sphi 0, %s25
      %s28 = sphi 0, %s26
      %s29 = sphi 0, %s27
      %s30 = sphi 0, %s28
      %s42 = sphi 0, %s44
      %s45 = sphi 0, %s42
      %s46 = sphi 0, %s45
      %s62 = sphi 0, %s46
      %s68 = sphi 0, %s70
      %s71 = sphi 0, %s68
      %s72 = sphi 0, %s71
      %s88 = sphi 0, %s72
      %s94 = sphi 0, %s96
      %s97 = sphi 0, %s94
      %s98 = sphi 0, %s97
      %s114 = sphi 0, %s98
    $region4: #{tpu_custom_call.1} parent=1 // loop_header_branch
      %21 = sbr.rel (%p19) target = $region8
    $region5: #{tpu_custom_call.1} parent=1 // loop_body
      %s23 = ssub.s32 %s18, 1
      %s24 = ssub.s32 %s18, 2
      %s31 = sadd.s32 1, %s26
      %p32 = scmp.ge.s32.totalorder %s31, 2
      %s33 = scalar_select %p32, 0, %s31
      %s34 = sadd.s32 1, %s25
      %s35 = scalar_select %p32, %s34, %s25
      %p36 = scmp.ge.s32.totalorder %s35, 2
      %s37 = scalar_select %p36, 0, %s35
      %s38 = ssub.s32 %s26, %s33
      %s39 = ssub.s32 %s25, %s37
      %s40 = sor.u32 %s38, %s39
      %p41 = scmp.eq.s32.totalorder %s40, 0
      %s43 = sadd.s32 %s42, 1
      %s44 = scalar_select %p41, %s42, %s43
      %p47 = pneg %p41
      %p48 = scmp.eq.s32.totalorder %s18, 3
      %p49 = por %p47, %p48
      %p50 = scmp.ne.s32.totalorder %s42, %s45
      %p51 = scmp.eq.s32.totalorder %s18, 0
      %p52 = por %p50, %p51
      %p53 = scmp.ne.s32.totalorder %s42, %s45
      %p54 = scmp.eq.s32.totalorder %s23, 3
      %p55 = por %p53, %p54
      %p56 = scmp.ne.s32.totalorder %s45, %s46
      %p57 = scmp.eq.s32.totalorder %s23, 0
      %p58 = por %p56, %p57
      %p59 = scmp.ne.s32.totalorder %s45, %s46
      %p60 = scmp.eq.s32.totalorder %s24, 3
      %p61 = por %p59, %p60
      %p63 = scmp.ne.s32.totalorder %s46, %s62
      %p64 = scmp.eq.s32.totalorder %s24, 0
      %p65 = por %p63, %p64
      %s66 = ssub.s32 %s25, %s37
      %p67 = scmp.eq.s32.totalorder %s66, 0
      %s69 = sadd.s32 %s68, 1
      %s70 = scalar_select %p67, %s68, %s69
      %p73 = pneg %p67
      %p74 = scmp.eq.s32.totalorder %s18, 3
      %p75 = por %p73, %p74
      %p76 = scmp.ne.s32.totalorder %s68, %s71
      %p77 = scmp.eq.s32.totalorder %s18, 0
      %p78 = por %p76, %p77
      %p79 = scmp.ne.s32.totalorder %s68, %s71
      %p80 = scmp.eq.s32.totalorder %s23, 3
      %p81 = por %p79, %p80
      %p82 = scmp.ne.s32.totalorder %s71, %s72
      %p83 = scmp.eq.s32.totalorder %s23, 0
      %p84 = por %p82, %p83
      %p85 = scmp.ne.s32.totalorder %s71, %s72
      %p86 = scmp.eq.s32.totalorder %s24, 3
      %p87 = por %p85, %p86
      %p89 = scmp.ne.s32.totalorder %s72, %s88
      %p90 = scmp.eq.s32.totalorder %s24, 0
      %p91 = por %p89, %p90
      %s92 = ssub.s32 %s25, %s37
      %p93 = scmp.eq.s32.totalorder %s92, 0
      %s95 = sadd.s32 %s94, 1
      %s96 = scalar_select %p93, %s94, %s95
      %p99 = pneg %p93
      %p100 = scmp.eq.s32.totalorder %s18, 3
      %p101 = por %p99, %p100
      %p102 = scmp.ne.s32.totalorder %s94, %s97
      %p103 = scmp.eq.s32.totalorder %s18, 0
      %p104 = por %p102, %p103
      %p105 = scmp.ne.s32.totalorder %s94, %s97
      %p106 = scmp.eq.s32.totalorder %s23, 3
      %p107 = por %p105, %p106
      %p108 = scmp.ne.s32.totalorder %s97, %s98
      %p109 = scmp.eq.s32.totalorder %s23, 0
      %p110 = por %p108, %p109
      %p111 = scmp.ne.s32.totalorder %s97, %s98
      %p112 = scmp.eq.s32.totalorder %s24, 3
      %p113 = por %p111, %p112
      %p115 = scmp.ne.s32.totalorder %s98, %s114
      %p116 = scmp.eq.s32.totalorder %s24, 0
      %p117 = por %p115, %p116
      %p118 = scmp.le.s32.totalorder 1, %s18
      %p119 = scmp.lt.s32.totalorder %s18, 5
      %p120 = pnand %p118, %p119
      %p121 = pneg %p120
      // Predicated region
      $region9: #{tpu_custom_call.1} parent=5 // pred_check
        _
      $region10: #{tpu_custom_call.1} parent=5 // pred_check_branch
        %123 = sbr.rel (%p120) target = $region12
      $region11: #{tpu_custom_call.1} parent=5 // pred_region
        %s124 = ssub.s32 %s18, 1
      $region12: #{tpu_custom_call.1} parent=5 // pred_fallthru
        _
      %p125 = scmp.lt.s32.totalorder %s18, 4
      // Predicated region
      $region13: #{tpu_custom_call.1} parent=5 // pred_check
        %p126 = pneg %p125
      $region14: #{tpu_custom_call.1} parent=5 // pred_check_branch
        %128 = sbr.rel (%p126) target = $region16
      $region15: #{tpu_custom_call.1} parent=5 // pred_region
        // Predicated region
        $region17: #{tpu_custom_call.1} parent=15 // pred_check
          %p129 = pneg %p52
        $region18: #{tpu_custom_call.1} parent=15 // pred_check_branch
          %131 = sbr.rel (%p129) target = $region20
        $region19: #{tpu_custom_call.1} parent=15 // pred_region
          %s132 = sand.u32 %s42, 1
          %s133 = scalar_lea.sflag [#allocation3], %s132
          %s134 = sand.u32 %s42, 1
          %s135 = smul.addr %s134, 4
          %s136 = scalar_lea.vmem [#allocation2], %s135
          %138 = vsyncadd %s133, 0
          %s139 = smul.addr %s26, 2
          %s140 = sadd.s32 %s25, %s139
          %s141 = smul.addr %s140, 4
          %s142 = scalar_lea.hbm %s0, %s141
          %s144 = sshll.u32 %s142, 4
          %s145 = int_to_ptr.hbm [resolvable:$true] %s144
          %s146 = sshll.u32 %s136, 4
          %s147 = int_to_ptr.vmem [resolvable:$true] %s146
          %149 = dma.hbm_to_vmem [thread:$0]  %s145, 64, %s147, %s133
        $region20: #{tpu_custom_call.1} parent=15 // pred_fallthru
          _
      $region16: #{tpu_custom_call.1} parent=5 // pred_fallthru
        _
      %p150 = scmp.le.s32.totalorder 1, %s18
      %p151 = scmp.lt.s32.totalorder %s18, 5
      %p152 = pnand %p150, %p151
      %p153 = pneg %p152
      // Predicated region
      $region21: #{tpu_custom_call.1} parent=5 // pred_check
        _
      $region22: #{tpu_custom_call.1} parent=5 // pred_check_branch
        %155 = sbr.rel (%p152) target = $region24
      $region23: #{tpu_custom_call.1} parent=5 // pred_region
        %s156 = ssub.s32 %s18, 1
        %s157 = sand.u32 %s45, 1
        %s158 = scalar_lea.sflag [#allocation3], %s157
        %s159 = sand.u32 %s45, 1
        %s160 = smul.addr %s159, 4
        %s161 = scalar_lea.vmem [#allocation2], %s160
        // Predicated region
        $region25: #{tpu_custom_call.1} parent=23 // pred_check
          %p162 = pneg %p58
        $region26: #{tpu_custom_call.1} parent=23 // pred_check_branch
          %164 = sbr.rel (%p162) target = $region28
        $region27: #{tpu_custom_call.1} parent=23 // pred_region
          %166 = dma.done %s158, 64
        $region28: #{tpu_custom_call.1} parent=23 // pred_fallthru
          _
        %s167 = sand.u32 %s45, 1
        %s168 = scalar_lea.sflag [#allocation3], %s167
        %s169 = sand.u32 %s45, 1
        %s170 = smul.addr %s169, 4
        %s171 = scalar_lea.vmem [#allocation2], %s170
        %p172 = pneg %p58
        %p173 = pneg %p55
        %p174 = pneg %p84
        %p175 = pneg %p81
        %s176 = sand.u32 %s71, 1
        %s177 = scalar_lea.sflag [#allocation4], %s176
        %s178 = sand.u32 %s71, 1
        %s179 = smul.addr %s178, 4
        %s180 = scalar_lea.vmem [#allocation5], %s179
        %p181 = pneg %p110
        %p182 = pneg %p107
        %s183 = sand.u32 %s97, 1
        %s184 = scalar_lea.sflag [#allocation7], %s183
        %s185 = sand.u32 %s97, 1
        %s186 = smul.addr %s185, 4
        %s187 = scalar_lea.vmem [#allocation6], %s186
        %p188 = scmp.eq.s32.totalorder %s28, 0
        // Predicated region
        $region29: #{tpu_custom_call.1} parent=23 // pred_check
          %p189 = pneg %p188
        $region30: #{tpu_custom_call.1} parent=23 // pred_check_branch
          %191 = sbr.rel (%p189) target = $region32
        $region31: #{tpu_custom_call.1} parent=23 // pred_region
          %192 = vst [vmem:[%s180] sm:$0xf] 0.0
          %193 = vst [vmem:[%s187] sm:$0xf] 0.0
        $region32: #{tpu_custom_call.1} parent=23 // pred_fallthru
          _
        %v194 = vld [vmem:[%s161] sm:$0xf]
        %v195 = vadd.f32 %v194, 0.0
        %v196 = vmul.f32 %v194, %v194
        %v197 = vadd.f32 %v196, 0.0
        %v198 = vld [vmem:[%s180] sm:$0xf]
        %v199 = vadd.f32 %v198, %v195
        %200 = vst [vmem:[%s180] sm:$0xf] %v199
        %v201 = vld [vmem:[%s187] sm:$0xf]
        %v202 = vadd.f32 %v201, %v197
        %203 = vst [vmem:[%s187] sm:$0xf] %v202
        %s204 = sand.u32 %s71, 1
        %s205 = scalar_lea.sflag [#allocation4], %s204
        %s206 = sand.u32 %s71, 1
        %s207 = smul.addr %s206, 4
        %s208 = scalar_lea.vmem [#allocation5], %s207
        %s209 = sand.u32 %s97, 1
        %s210 = scalar_lea.sflag [#allocation7], %s209
        %s211 = sand.u32 %s97, 1
        %s212 = smul.addr %s211, 4
        %s213 = scalar_lea.vmem [#allocation6], %s212
        // Predicated region
        $region33: #{tpu_custom_call.1} parent=23 // pred_check
          %p214 = pneg %p81
        $region34: #{tpu_custom_call.1} parent=23 // pred_check_branch
          %216 = sbr.rel (%p214) target = $region36
        $region35: #{tpu_custom_call.1} parent=23 // pred_region
          %218 = vsyncadd %s205, 0
          %s219 = smul.addr %s27, 4
          %s220 = scalar_lea.hbm %s1, %s219
          %s222 = sshll.u32 %s208, 4
          %s223 = int_to_ptr.vmem [resolvable:$true] %s222
          %s224 = sshll.u32 %s220, 4
          %s225 = int_to_ptr.hbm [resolvable:$true] %s224
          %227 = dma.vmem_to_hbm [thread:$0]  %s223, 64, %s225, %s205
        $region36: #{tpu_custom_call.1} parent=23 // pred_fallthru
          _
        // Predicated region
        $region37: #{tpu_custom_call.1} parent=23 // pred_check
          %p228 = pneg %p107
        $region38: #{tpu_custom_call.1} parent=23 // pred_check_branch
          %230 = sbr.rel (%p228) target = $region40
        $region39: #{tpu_custom_call.1} parent=23 // pred_region
          %232 = vsyncadd %s210, 0
          %s233 = smul.addr %s27, 4
          %s234 = scalar_lea.hbm %s2, %s233
          %s236 = sshll.u32 %s213, 4
          %s237 = int_to_ptr.vmem [resolvable:$true] %s236
          %s238 = sshll.u32 %s234, 4
          %s239 = int_to_ptr.hbm [resolvable:$true] %s238
          %241 = dma.vmem_to_hbm [thread:$0]  %s237, 64, %s239, %s210
        $region40: #{tpu_custom_call.1} parent=23 // pred_fallthru
          _
      $region24: #{tpu_custom_call.1} parent=5 // pred_fallthru
        _
      %p242 = scmp.le.s32.totalorder 2, %s18
      // Predicated region
      $region41: #{tpu_custom_call.1} parent=5 // pred_check
        %p243 = pneg %p242
      $region42: #{tpu_custom_call.1} parent=5 // pred_check_branch
        %245 = sbr.rel (%p243) target = $region44
      $region43: #{tpu_custom_call.1} parent=5 // pred_region
        %s246 = ssub.s32 %s18, 2
        // Predicated region
        $region45: #{tpu_custom_call.1} parent=43 // pred_check
          %p247 = pneg %p87
        $region46: #{tpu_custom_call.1} parent=43 // pred_check_branch
          %249 = sbr.rel (%p247) target = $region48
        $region47: #{tpu_custom_call.1} parent=43 // pred_region
          %s250 = sand.u32 %s72, 1
          %s251 = scalar_lea.sflag [#allocation4], %s250
          %s252 = sand.u32 %s72, 1
          %s253 = smul.addr %s252, 4
          %s254 = scalar_lea.vmem [#allocation5], %s253
          %256 = dma.done %s251, 64
        $region48: #{tpu_custom_call.1} parent=43 // pred_fallthru
          _
        // Predicated region
        $region49: #{tpu_custom_call.1} parent=43 // pred_check
          %p257 = pneg %p113
        $region50: #{tpu_custom_call.1} parent=43 // pred_check_branch
          %259 = sbr.rel (%p257) target = $region52
        $region51: #{tpu_custom_call.1} parent=43 // pred_region
          %s260 = sand.u32 %s98, 1
          %s261 = scalar_lea.sflag [#allocation7], %s260
          %s262 = sand.u32 %s98, 1
          %s263 = smul.addr %s262, 4
          %s264 = scalar_lea.vmem [#allocation6], %s263
          %266 = dma.done %s261, 64
        $region52: #{tpu_custom_call.1} parent=43 // pred_fallthru
          _
      $region44: #{tpu_custom_call.1} parent=5 // pred_fallthru
        _
    $region6: #{tpu_custom_call.1} parent=1 // loop_footer
      %s22 = sadd.s32 1, %s18
    $region7: #{tpu_custom_call.1} parent=1 // loop_footer_branch
      %17 = sbr.rel target = $region3
    $region8: #{tpu_custom_call.1} parent=1 // loop_exit
      _
    %267 = vsyncpa [#allocation3], 1
    %s268 = scalar_lea.sflag [#allocation3], 1
    %269 = vsyncpa %s268, 1
    %270 = vsyncpa [#allocation4], 1
    %s271 = scalar_lea.sflag [#allocation4], 1
    %272 = vsyncpa %s271, 1
    %273 = vsyncpa [#allocation7], 1
    %s274 = scalar_lea.sflag [#allocation7], 1
    %275 = vsyncpa %s274, 1

</llo_original>
